<compile_context>
chip_gen: v7x
topology: tpu7x:2x2x1
jax: 0.10.0
libtpu: 0.0.40
codegen_flags: <defaults>
</compile_context>

<pallas_src>
import functools

import jax
import jax.numpy as jnp
from jax.experimental import pallas as pl
from jax.experimental.pallas import tpu as pltpu


def _make_kernel(d_ins, n_layers, input_relu):
    """Kernel for one node group (one grid step).

    Ref order: h_ref, valid_ref, wb_0, ..., wb_{L-1}, o_ref
      h_ref:     (1, N, G*input_ch)
      valid_ref: (1, N, G*output_ch)
      wb_l:      (1, G*d_in_l + 1, G*d_out_l)   block-diagonal weight, bias = last row
      o_ref:     (1, N, G*output_ch)
    """

    def kernel(h_ref, valid_ref, *refs):
        o_ref = refs[-1]
        wb_refs = refs[:-1]

        x = h_ref[0]                                   # (N, G*input_ch)
        if input_relu:
            x = jnp.maximum(x, 0.0)

        for l in range(n_layers):
            d_in = d_ins[l]
            w = wb_refs[l][0, :d_in, :]                # (G*d_in, G*d_out) block-diag
            b = wb_refs[l][0, d_in:d_in + 1, :]        # (1, G*d_out)
            x = jnp.dot(x, w, preferred_element_type=jnp.float32) + b
            if l < n_layers - 1:
                x = jnp.maximum(x, 0.0)

        mask = valid_ref[0] > 0.0                      # (N, G*output_ch)
        o_ref[0] = jnp.where(mask, x, 0.0).astype(o_ref.dtype)

    return kernel


@functools.partial(jax.jit, static_argnames=("input_relu", "group_size"))
def per_node_valid_mlp(h, valid, weights, biases, *, input_relu=True, group_size=8):
    """Pallas implementation of PerNodeValidMLP.forward.

    Args:
      h:       [N, n_nodes, input_ch] float32
      valid:   [N, n_nodes]           (>0 is valid)
      weights: list of per-node weight stacks, weights[l]: [n_nodes, d_in_l, d_out_l]
      biases:  list of per-node bias stacks,   biases[l]:  [n_nodes, 1, d_out_l]
      group_size: nodes fused per MXU matmul.  8 -> 256-lane operands (v6e/v7x),
                  use 4 -> 128 lanes on v5e.
    Returns:
      [N, n_nodes, output_ch] float32
    """
    N, n_nodes, input_ch = h.shape
    output_ch = weights[-1].shape[-1]
    n_layers = len(weights)

    G = min(group_size, n_nodes)
    NG = -(-n_nodes // G)                 # number of node groups == grid size
    n_pad = NG * G - n_nodes
    f32 = jnp.float32

    # ---- pack inputs per node group (tiny one-time XLA reshapes, < 64 KiB) ----
    # h: [N, n_nodes, C] -> [NG, N, G*C]   (node j of group g at columns j*C:(j+1)*C)
    h_p = jnp.pad(h.astype(f32), ((0, 0), (0, n_pad), (0, 0)))
    h_p = h_p.reshape(N, NG, G, input_ch).transpose(1, 0, 2, 3)
    h_p = h_p.reshape(NG, N, G * input_ch)

    # valid mask: [N, n_nodes] -> [NG, N, G*output_ch]
    v_p = jnp.pad(valid.astype(f32), ((0, 0), (0, n_pad)))
    v_p = v_p.reshape(N, NG, G).transpose(1, 0, 2)                    # [NG, N, G]
    v_p = jnp.repeat(v_p[..., None], output_ch, axis=-1)
    v_p = v_p.reshape(NG, N, G * output_ch)

    # ---- pack parameters: block-diagonal weights with bias folded as last row ----
    eye = jnp.eye(G, dtype=f32)
    wb_slabs, d_ins = [], []
    for w, b in zip(weights, biases):
        d_in, d_out = w.shape[-2], w.shape[-1]
        w_g = jnp.pad(w.astype(f32), ((0, n_pad), (0, 0), (0, 0)))
        w_g = w_g.reshape(NG, G, d_in, d_out)
        b_g = jnp.pad(b.astype(f32), ((0, n_pad), (0, 0), (0, 0)))
        b_g = b_g.reshape(NG, G, d_out)
        # block-diagonal: [NG, G*d_in, G*d_out], block (j, j) = node j's weight
        w_bd = jnp.einsum("gjab,jk->gjakb", w_g, eye)
        w_bd = w_bd.reshape(NG, G * d_in, G * d_out)
        b_row = b_g.reshape(NG, 1, G * d_out)
        wb_slabs.append(jnp.concatenate([w_bd, b_row], axis=1))      # [NG, G*d_in+1, G*d_out]
        d_ins.append(G * d_in)

    # ---- one grid step per node group; everything else is full-dim blocks ----
    in_specs = [
        pl.BlockSpec((1, N, G * input_ch), lambda g: (g, 0, 0)),      # packed h
        pl.BlockSpec((1, N, G * output_ch), lambda g: (g, 0, 0)),     # packed valid mask
    ]
    for slab in wb_slabs:
        in_specs.append(
            pl.BlockSpec((1, slab.shape[1], slab.shape[2]), lambda g: (g, 0, 0)))
    out_spec = pl.BlockSpec((1, N, G * output_ch), lambda g: (g, 0, 0))

    out_p = pl.pallas_call(
        _make_kernel(tuple(d_ins), n_layers, input_relu),
        out_shape=jax.ShapeDtypeStruct((NG, N, G * output_ch), f32),
        grid_spec=pltpu.PrefetchScalarGridSpec(
            num_scalar_prefetch=0,
            grid=(NG,),
            in_specs=in_specs,
            out_specs=out_spec,
        ),
        compiler_params=pltpu.CompilerParams(
            dimension_semantics=("parallel",)),   # >1 "parallel" step -> both v7x TCs busy
    )(h_p, v_p, *wb_slabs)

    # unpack [NG, N, G*output_ch] -> [N, n_nodes, output_ch]
    out = out_p.transpose(1, 0, 2).reshape(N, NG * G, output_ch)
    return out[:, :n_nodes, :]


def init_params(key, n_nodes, input_ch, W, output_ch, D):
    """Deterministic per-node parameter stacks matching the PyTorch layer shapes."""
    if D == 1:
        dims = [(input_ch, output_ch)]
    else:
        dims = [(input_ch, W)] + [(W, W)] * (D - 2) + [(W, output_ch)]
    weights, biases = [], []
    for (d_in, d_out) in dims:
        key, kw, kb = jax.random.split(key, 3)
        bound = 1.0 / (d_in ** 0.5)  # mimic PyTorch nn.Linear default init range
        weights.append(jax.random.uniform(
            kw, (n_nodes, d_in, d_out), jnp.float32, -bound, bound))
        biases.append(jax.random.uniform(
            kb, (n_nodes, 1, d_out), jnp.float32, -bound, bound))
    return weights, biases


def reference_jax(h, valid, weights, biases, input_relu=True):
    """Pure-JAX reference with identical masking semantics."""
    x = jnp.transpose(h, (1, 0, 2)).astype(jnp.float32)             # [n_nodes, N, C]
    if input_relu:
        x = jnp.maximum(x, 0.0)
    n_layers = len(weights)
    for l, (w, b) in enumerate(zip(weights, biases)):
        x = jnp.einsum("nsc,ncd->nsd", x, w) + b
        if l < n_layers - 1:
            x = jnp.maximum(x, 0.0)
    mask = (jnp.transpose(valid, (1, 0)) > 0)[..., None]
    x = jnp.where(mask, x, 0.0)
    return jnp.transpose(x, (1, 0, 2))


if __name__ == "__main__":
    # Small shapes consistent with the module defaults.
    N_samples = 16
    n_nodes = 24
    input_ch = 32
    W = 32
    output_ch = 1
    D = 2

    key = jax.random.PRNGKey(0)
    k_h, k_v, k_p = jax.random.split(key, 3)

    h = jax.random.normal(k_h, (N_samples, n_nodes, input_ch), jnp.float32)
    valid = (jax.random.uniform(k_v, (N_samples, n_nodes)) > 0.5).astype(jnp.float32)
    weights, biases = init_params(k_p, n_nodes, input_ch, W, output_ch, D)

    out = per_node_valid_mlp(h, valid, weights, biases, input_relu=True)
    out = jax.block_until_ready(out)

    ref = reference_jax(h, valid, weights, biases, input_relu=True)
    assert out.shape == (N_samples, n_nodes, output_ch)
    assert jnp.allclose(out, ref, rtol=1e-2, atol=1e-2), "mismatch vs reference"

    print("KERNEL_OK")
</pallas_src>

<mosaic_0001>
module attributes {stable_mosaic.version = 11 : i64} {
  func.func @kernel(%arg0: i32, %arg1: memref<1x16x256xf32, #tpu.memory_space<vmem>>, %arg2: memref<1x16x8xf32, #tpu.memory_space<vmem>>, %arg3: memref<1x257x256xf32, #tpu.memory_space<vmem>>, %arg4: memref<1x257x8xf32, #tpu.memory_space<vmem>>, %arg5: memref<1x16x8xf32, #tpu.memory_space<vmem>>) attributes {dimension_semantics = [#tpu.dimension_semantics<parallel>], iteration_bounds = array<i64: 3>, scalar_prefetch = 0 : i64, scratch_operands = 0 : i64, tpu.core_type = #tpu.core_type<tc>, window_params = [{transform_indices = @transform_0, window_bounds = array<i64: 1, 16, 256>}, {transform_indices = @transform_1, window_bounds = array<i64: 1, 16, 8>}, {transform_indices = @transform_2, window_bounds = array<i64: 1, 257, 256>}, {transform_indices = @transform_3, window_bounds = array<i64: 1, 257, 8>}, {transform_indices = @transform_4, window_bounds = array<i64: 1, 16, 8>}]} {
    %c0 = arith.constant 0 : index
    %c0_0 = arith.constant 0 : index
    %c0_1 = arith.constant 0 : index
    %0 = vector.load %arg1[%c0, %c0_0, %c0_1] : memref<1x16x256xf32, #tpu.memory_space<vmem>>, vector<1x16x256xf32>
    %1 = vector.shape_cast %0 : vector<1x16x256xf32> to vector<16x256xf32>
    %cst = arith.constant 0.000000e+00 : f32
    %2 = vector.broadcast %cst : f32 to vector<16x256xf32>
    %3 = arith.maximumf %1, %2 : vector<16x256xf32>
    %c0_2 = arith.constant 0 : index
    %c0_3 = arith.constant 0 : index
    %c0_4 = arith.constant 0 : index
    %4 = vector.load %arg3[%c0_2, %c0_3, %c0_4] : memref<1x257x256xf32, #tpu.memory_space<vmem>>, vector<1x256x256xf32>
    %5 = vector.shape_cast %4 : vector<1x256x256xf32> to vector<256x256xf32>
    %c0_5 = arith.constant 0 : index
    %c256 = arith.constant 256 : index
    %c0_6 = arith.constant 0 : index
    %6 = vector.load %arg3[%c0_5, %c256, %c0_6] : memref<1x257x256xf32, #tpu.memory_space<vmem>>, vector<1x1x256xf32>
    %7 = vector.shape_cast %6 : vector<1x1x256xf32> to vector<1x256xf32>
    %cst_7 = arith.constant dense<0.000000e+00> : vector<16x256xf32>
    %8 = tpu.matmul %3, %5, %cst_7 {dimension_numbers = #tpu.dot_dimension_numbers<[1], [0], [0], [1], [0, 0, 1, 1], [], []>} : vector<16x256xf32>, vector<256x256xf32>, vector<16x256xf32> -> vector<16x256xf32>
    %9 = vector.broadcast %7 : vector<1x256xf32> to vector<16x256xf32>
    %10 = arith.addf %8, %9 : vector<16x256xf32>
    %cst_8 = arith.constant 0.000000e+00 : f32
    %11 = vector.broadcast %cst_8 : f32 to vector<16x256xf32>
    %12 = arith.maximumf %10, %11 : vector<16x256xf32>
    %c0_9 = arith.constant 0 : index
    %c0_10 = arith.constant 0 : index
    %c0_11 = arith.constant 0 : index
    %13 = vector.load %arg4[%c0_9, %c0_10, %c0_11] : memref<1x257x8xf32, #tpu.memory_space<vmem>>, vector<1x256x8xf32>
    %14 = vector.shape_cast %13 : vector<1x256x8xf32> to vector<256x8xf32>
    %c0_12 = arith.constant 0 : index
    %c256_13 = arith.constant 256 : index
    %c0_14 = arith.constant 0 : index
    %15 = vector.load %arg4[%c0_12, %c256_13, %c0_14] : memref<1x257x8xf32, #tpu.memory_space<vmem>>, vector<1x1x8xf32>
    %16 = vector.shape_cast %15 : vector<1x1x8xf32> to vector<1x8xf32>
    %cst_15 = arith.constant dense<0.000000e+00> : vector<16x8xf32>
    %17 = tpu.matmul %12, %14, %cst_15 {dimension_numbers = #tpu.dot_dimension_numbers<[1], [0], [0], [1], [0, 0, 1, 1], [], []>} : vector<16x256xf32>, vector<256x8xf32>, vector<16x8xf32> -> vector<16x8xf32>
    %18 = vector.broadcast %16 : vector<1x8xf32> to vector<16x8xf32>
    %19 = arith.addf %17, %18 : vector<16x8xf32>
    %c0_16 = arith.constant 0 : index
    %c0_17 = arith.constant 0 : index
    %c0_18 = arith.constant 0 : index
    %20 = vector.load %arg2[%c0_16, %c0_17, %c0_18] : memref<1x16x8xf32, #tpu.memory_space<vmem>>, vector<1x16x8xf32>
    %21 = vector.shape_cast %20 : vector<1x16x8xf32> to vector<16x8xf32>
    %cst_19 = arith.constant 0.000000e+00 : f32
    %22 = vector.broadcast %cst_19 : f32 to vector<16x8xf32>
    %23 = arith.cmpf ogt, %21, %22 : vector<16x8xf32>
    %cst_20 = arith.constant 0.000000e+00 : f32
    %24 = vector.broadcast %cst_20 : f32 to vector<16x8xf32>
    %25 = arith.select %23, %19, %24 : vector<16x8xi1>, vector<16x8xf32>
    %c0_21 = arith.constant 0 : index
    %c0_22 = arith.constant 0 : index
    %c0_23 = arith.constant 0 : index
    %26 = vector.load %arg5[%c0_21, %c0_22, %c0_23] : memref<1x16x8xf32, #tpu.memory_space<vmem>>, vector<1x16x8xf32>
    %27 = vector.shape_cast %26 : vector<1x16x8xf32> to vector<16x8xf32>
    %28 = vector.shape_cast %25 : vector<16x8xf32> to vector<1x16x8xf32>
    tpu.vector_store %arg5[%c0_21, %c0_22, %c0_23], %28 {strides = array<i32>} : memref<1x16x8xf32, #tpu.memory_space<vmem>>, vector<1x16x8xf32>,
    return
  }
  func.func @transform_0(%arg0: i32) -> (i32, i32, i32) {
    %c0_i32 = arith.constant 0 : i32
    %c0_i32_0 = arith.constant 0 : i32
    %c0_i32_1 = arith.constant 0 : i32
    return %arg0, %c0_i32, %c0_i32_0 : i32, i32, i32
  }
  func.func @transform_1(%arg0: i32) -> (i32, i32, i32) {
    %c0_i32 = arith.constant 0 : i32
    %c0_i32_0 = arith.constant 0 : i32
    %c0_i32_1 = arith.constant 0 : i32
    return %arg0, %c0_i32, %c0_i32_0 : i32, i32, i32
  }
  func.func @transform_2(%arg0: i32) -> (i32, i32, i32) {
    %c0_i32 = arith.constant 0 : i32
    %c0_i32_0 = arith.constant 0 : i32
    %c0_i32_1 = arith.constant 0 : i32
    return %arg0, %c0_i32, %c0_i32_0 : i32, i32, i32
  }
  func.func @transform_3(%arg0: i32) -> (i32, i32, i32) {
    %c0_i32 = arith.constant 0 : i32
    %c0_i32_0 = arith.constant 0 : i32
    %c0_i32_1 = arith.constant 0 : i32
    return %arg0, %c0_i32, %c0_i32_0 : i32, i32, i32
  }
  func.func @transform_4(%arg0: i32) -> (i32, i32, i32) {
    %c0_i32 = arith.constant 0 : i32
    %c0_i32_0 = arith.constant 0 : i32
    %c0_i32_1 = arith.constant 0 : i32
    return %arg0, %c0_i32, %c0_i32_0 : i32, i32, i32
  }
}

</mosaic_0001>

<llo_original>
// kernel: per_node_valid_mlp.1
$region0: #{per_node_valid_mlp.1}
  #allocation0 [shape = 'u32[]', space=smem, size = 0x4, offset = 0x4, fixed_abs, tag = 'smem constant byte address 0x4 - core index']
  #allocation1 [shape = 'u32[144,128]{1,0:T(1,128)}', space=vmem, size = 0x12000, scoped, tag = 'internal scratch']
  %s0 = inlined_call_operand.vmem [shape: f32[3,16,256], index: 0, kind: input, shape index: {}]
  %s1 = inlined_call_operand.vmem [shape: f32[3,16,8], index: 1, kind: input, shape index: {}]
  %s2 = inlined_call_operand.vmem [shape: f32[3,257,256], index: 2, kind: input, shape index: {}]
  %s3 = inlined_call_operand.vmem [shape: f32[3,257,8], index: 3, kind: input, shape index: {}]
  %s4 = inlined_call_operand.vmem [shape: f32[3,16,8], index: 4, kind: output, shape index: {}]
  %s5 = sld [smem:[#allocation0]]
  $region49: #{per_node_valid_mlp.1} parent=0
    _
  %s7 = ssub.s32 1, %s5
  %s8 = scalar_select 0, %s7, %s5
  loop: start=0, step=1, limit=5
  $region2: #{per_node_valid_mlp.1} parent=0 // loop_pre_header
    _
  $region3: #{per_node_valid_mlp.1} parent=0 // loop_header
    %s10 = sphi 0, %s14
    %p11 = scmp.ge.s32.totalorder %s10, 5
    %s20 = sphi 0, %s22
    %s23 = sphi 0, %s20
    %s24 = sphi 0, %s23
    %s40 = sphi 0, %s24
    %s46 = sphi 0, %s48
    %s49 = sphi 0, %s46
    %s50 = sphi 0, %s49
    %s66 = sphi 0, %s50
    %s72 = sphi 0, %s74
    %s75 = sphi 0, %s72
    %s76 = sphi 0, %s75
    %s92 = sphi 0, %s76
    %s98 = sphi 0, %s100
    %s101 = sphi 0, %s98
    %s102 = sphi 0, %s101
    %s118 = sphi 0, %s102
    %s124 = sphi 0, %s126
    %s127 = sphi 0, %s124
    %s128 = sphi 0, %s127
    %s144 = sphi 0, %s128
  $region4: #{per_node_valid_mlp.1} parent=0 // loop_header_branch
    %13 = sbr.rel (%p11) target = $region8
  $region5: #{per_node_valid_mlp.1} parent=0 // loop_body
    %s15 = ssub.s32 %s10, 1
    %s16 = ssub.s32 %s10, 2
    %s17 = sadd.s32 %s10, 1
    %s18 = ssub.s32 %s10, %s17
    %p19 = scmp.eq.s32.totalorder %s18, 0
    %s21 = sadd.s32 %s20, 1
    %s22 = scalar_select %p19, %s20, %s21
    %p25 = pneg %p19
    %p26 = scmp.eq.s32.totalorder %s10, 2
    %p27 = por %p25, %p26
    %p28 = scmp.ne.s32.totalorder %s20, %s23
    %p29 = scmp.eq.s32.totalorder %s10, 0
    %p30 = por %p28, %p29
    %p31 = scmp.ne.s32.totalorder %s20, %s23
    %p32 = scmp.eq.s32.totalorder %s15, 2
    %p33 = por %p31, %p32
    %p34 = scmp.ne.s32.totalorder %s23, %s24
    %p35 = scmp.eq.s32.totalorder %s15, 0
    %p36 = por %p34, %p35
    %p37 = scmp.ne.s32.totalorder %s23, %s24
    %p38 = scmp.eq.s32.totalorder %s16, 2
    %p39 = por %p37, %p38
    %p41 = scmp.ne.s32.totalorder %s24, %s40
    %p42 = scmp.eq.s32.totalorder %s16, 0
    %p43 = por %p41, %p42
    %s44 = ssub.s32 %s10, %s17
    %p45 = scmp.eq.s32.totalorder %s44, 0
    %s47 = sadd.s32 %s46, 1
    %s48 = scalar_select %p45, %s46, %s47
    %p51 = pneg %p45
    %p52 = scmp.eq.s32.totalorder %s10, 2
    %p53 = por %p51, %p52
    %p54 = scmp.ne.s32.totalorder %s46, %s49
    %p55 = scmp.eq.s32.totalorder %s10, 0
    %p56 = por %p54, %p55
    %p57 = scmp.ne.s32.totalorder %s46, %s49
    %p58 = scmp.eq.s32.totalorder %s15, 2
    %p59 = por %p57, %p58
    %p60 = scmp.ne.s32.totalorder %s49, %s50
    %p61 = scmp.eq.s32.totalorder %s15, 0
    %p62 = por %p60, %p61
    %p63 = scmp.ne.s32.totalorder %s49, %s50
    %p64 = scmp.eq.s32.totalorder %s16, 2
    %p65 = por %p63, %p64
    %p67 = scmp.ne.s32.totalorder %s50, %s66
    %p68 = scmp.eq.s32.totalorder %s16, 0
    %p69 = por %p67, %p68
    %s70 = ssub.s32 %s10, %s17
    %p71 = scmp.eq.s32.totalorder %s70, 0
    %s73 = sadd.s32 %s72, 1
    %s74 = scalar_select %p71, %s72, %s73
    %p77 = pneg %p71
    %p78 = scmp.eq.s32.totalorder %s10, 2
    %p79 = por %p77, %p78
    %p80 = scmp.ne.s32.totalorder %s72, %s75
    %p81 = scmp.eq.s32.totalorder %s10, 0
    %p82 = por %p80, %p81
    %p83 = scmp.ne.s32.totalorder %s72, %s75
    %p84 = scmp.eq.s32.totalorder %s15, 2
    %p85 = por %p83, %p84
    %p86 = scmp.ne.s32.totalorder %s75, %s76
    %p87 = scmp.eq.s32.totalorder %s15, 0
    %p88 = por %p86, %p87
    %p89 = scmp.ne.s32.totalorder %s75, %s76
    %p90 = scmp.eq.s32.totalorder %s16, 2
    %p91 = por %p89, %p90
    %p93 = scmp.ne.s32.totalorder %s76, %s92
    %p94 = scmp.eq.s32.totalorder %s16, 0
    %p95 = por %p93, %p94
    %s96 = ssub.s32 %s10, %s17
    %p97 = scmp.eq.s32.totalorder %s96, 0
    %s99 = sadd.s32 %s98, 1
    %s100 = scalar_select %p97, %s98, %s99
    %p103 = pneg %p97
    %p104 = scmp.eq.s32.totalorder %s10, 2
    %p105 = por %p103, %p104
    %p106 = scmp.ne.s32.totalorder %s98, %s101
    %p107 = scmp.eq.s32.totalorder %s10, 0
    %p108 = por %p106, %p107
    %p109 = scmp.ne.s32.totalorder %s98, %s101
    %p110 = scmp.eq.s32.totalorder %s15, 2
    %p111 = por %p109, %p110
    %p112 = scmp.ne.s32.totalorder %s101, %s102
    %p113 = scmp.eq.s32.totalorder %s15, 0
    %p114 = por %p112, %p113
    %p115 = scmp.ne.s32.totalorder %s101, %s102
    %p116 = scmp.eq.s32.totalorder %s16, 2
    %p117 = por %p115, %p116
    %p119 = scmp.ne.s32.totalorder %s102, %s118
    %p120 = scmp.eq.s32.totalorder %s16, 0
    %p121 = por %p119, %p120
    %s122 = ssub.s32 %s10, %s17
    %p123 = scmp.eq.s32.totalorder %s122, 0
    %s125 = sadd.s32 %s124, 1
    %s126 = scalar_select %p123, %s124, %s125
    %p129 = pneg %p123
    %p130 = scmp.eq.s32.totalorder %s10, 2
    %p131 = por %p129, %p130
    %p132 = scmp.ne.s32.totalorder %s124, %s127
    %p133 = scmp.eq.s32.totalorder %s10, 0
    %p134 = por %p132, %p133
    %p135 = scmp.ne.s32.totalorder %s124, %s127
    %p136 = scmp.eq.s32.totalorder %s15, 2
    %p137 = por %p135, %p136
    %p138 = scmp.ne.s32.totalorder %s127, %s128
    %p139 = scmp.eq.s32.totalorder %s15, 0
    %p140 = por %p138, %p139
    %p141 = scmp.ne.s32.totalorder %s127, %s128
    %p142 = scmp.eq.s32.totalorder %s16, 2
    %p143 = por %p141, %p142
    %p145 = scmp.ne.s32.totalorder %s128, %s144
    %p146 = scmp.eq.s32.totalorder %s16, 0
    %p147 = por %p145, %p146
    %p148 = scmp.le.s32.totalorder 1, %s10
    %p149 = scmp.lt.s32.totalorder %s10, 4
    %p150 = pnand %p148, %p149
    %p151 = pneg %p150
    // Predicated region
    $region9: #{per_node_valid_mlp.1} parent=5 // pred_check
      _
    $region10: #{per_node_valid_mlp.1} parent=5 // pred_check_branch
      %153 = sbr.rel (%p150) target = $region12
    $region11: #{per_node_valid_mlp.1} parent=5 // pred_region
      %s154 = ssub.s32 %s10, 1
    $region12: #{per_node_valid_mlp.1} parent=5 // pred_fallthru
      _
    %p155 = scmp.lt.s32.totalorder %s10, 3
    // Predicated region
    $region13: #{per_node_valid_mlp.1} parent=5 // pred_check
      %p156 = pneg %p155
    $region14: #{per_node_valid_mlp.1} parent=5 // pred_check_branch
      %158 = sbr.rel (%p156) target = $region16
    $region15: #{per_node_valid_mlp.1} parent=5 // pred_region
      // Predicated region
      $region17: #{per_node_valid_mlp.1} parent=15 // pred_check
        %p159 = pneg %p30
      $region18: #{per_node_valid_mlp.1} parent=15 // pred_check_branch
        %161 = sbr.rel (%p159) target = $region20
      $region19: #{per_node_valid_mlp.1} parent=15 // pred_region
        %p162 = scmp.lt.s32.totalorder %s10, 2
        %s163 = scalar_select %p162, %s10, 2
        %s164 = smul.addr %s163, 4
        %s165 = smul.addr %s164, 8
        %s166 = scalar_lea.vmem %s0, %s165
      $region20: #{per_node_valid_mlp.1} parent=15 // pred_fallthru
        _
      // Predicated region
      $region21: #{per_node_valid_mlp.1} parent=15 // pred_check
        %p167 = pneg %p56
      $region22: #{per_node_valid_mlp.1} parent=15 // pred_check_branch
        %169 = sbr.rel (%p167) target = $region24
      $region23: #{per_node_valid_mlp.1} parent=15 // pred_region
        %p170 = scmp.lt.s32.totalorder %s10, 2
        %s171 = scalar_select %p170, %s10, 2
        %s172 = smul.addr %s171, 2
        %s173 = smul.addr %s172, 8
        %s174 = scalar_lea.vmem %s1, %s173
      $region24: #{per_node_valid_mlp.1} parent=15 // pred_fallthru
        _
      // Predicated region
      $region25: #{per_node_valid_mlp.1} parent=15 // pred_check
        %p175 = pneg %p82
      $region26: #{per_node_valid_mlp.1} parent=15 // pred_check_branch
        %177 = sbr.rel (%p175) target = $region28
      $region27: #{per_node_valid_mlp.1} parent=15 // pred_region
        %p178 = scmp.lt.s32.totalorder %s10, 2
        %s179 = scalar_select %p178, %s10, 2
        %s180 = smul.addr %s179, 66
        %s181 = smul.addr %s180, 8
        %s182 = scalar_lea.vmem %s2, %s181
      $region28: #{per_node_valid_mlp.1} parent=15 // pred_fallthru
        _
      // Predicated region
      $region29: #{per_node_valid_mlp.1} parent=15 // pred_check
        %p183 = pneg %p108
      $region30: #{per_node_valid_mlp.1} parent=15 // pred_check_branch
        %185 = sbr.rel (%p183) target = $region32
      $region31: #{per_node_valid_mlp.1} parent=15 // pred_region
        %p186 = scmp.lt.s32.totalorder %s10, 2
        %s187 = scalar_select %p186, %s10, 2
        %s188 = smul.addr %s187, 33
        %s189 = smul.addr %s188, 8
        %s190 = scalar_lea.vmem %s3, %s189
      $region32: #{per_node_valid_mlp.1} parent=15 // pred_fallthru
        _
    $region16: #{per_node_valid_mlp.1} parent=5 // pred_fallthru
      _
    %p191 = scmp.le.s32.totalorder 1, %s10
    %p192 = scmp.lt.s32.totalorder %s10, 4
    %p193 = pnand %p191, %p192
    %p194 = pneg %p193
    // Predicated region
    $region33: #{per_node_valid_mlp.1} parent=5 // pred_check
      _
    $region34: #{per_node_valid_mlp.1} parent=5 // pred_check_branch
      %196 = sbr.rel (%p193) target = $region36
    $region35: #{per_node_valid_mlp.1} parent=5 // pred_region
      %s197 = ssub.s32 %s10, 1
      %p198 = scmp.lt.s32.totalorder %s15, 2
      %s199 = scalar_select %p198, %s15, 2
      %s200 = smul.addr %s199, 4
      %s201 = smul.addr %s200, 8
      %s202 = scalar_lea.vmem %s0, %s201
      %p203 = pneg %p36
      %p204 = pneg %p33
      %p205 = scmp.lt.s32.totalorder %s15, 2
      %s206 = scalar_select %p205, %s15, 2
      %s207 = smul.addr %s206, 2
      %s208 = smul.addr %s207, 8
      %s209 = scalar_lea.vmem %s1, %s208
      %p210 = pneg %p62
      %p211 = pneg %p59
      %p212 = scmp.lt.s32.totalorder %s15, 2
      %s213 = scalar_select %p212, %s15, 2
      %s214 = smul.addr %s213, 66
      %s215 = smul.addr %s214, 8
      %s216 = scalar_lea.vmem %s2, %s215
      %p217 = pneg %p88
      %p218 = pneg %p85
      %p219 = scmp.lt.s32.totalorder %s15, 2
      %s220 = scalar_select %p219, %s15, 2
      %s221 = smul.addr %s220, 33
      %s222 = smul.addr %s221, 8
      %s223 = scalar_lea.vmem %s3, %s222
      %p224 = pneg %p114
      %p225 = pneg %p111
      %p226 = pneg %p140
      %p227 = pneg %p137
      %p228 = scmp.lt.s32.totalorder %s15, 2
      %s229 = scalar_select %p228, %s15, 2
      %s230 = smul.addr %s229, 2
      %s231 = smul.addr %s230, 8
      %s232 = scalar_lea.vmem %s4, %s231
      %p233 = scmp.lt.s32.totalorder %s15, 2
      %s234 = scalar_select %p233, %s15, 2
      %s235 = smul.addr %s234, 4
      %s236 = smul.addr %s235, 8
      %s237 = scalar_lea.vmem %s0, %s236
      %p238 = scmp.lt.s32.totalorder %s15, 2
      %s239 = scalar_select %p238, %s15, 2
      %s240 = smul.addr %s239, 2
      %s241 = smul.addr %s240, 8
      %s242 = scalar_lea.vmem %s1, %s241
      %p243 = scmp.lt.s32.totalorder %s15, 2
      %s244 = scalar_select %p243, %s15, 2
      %s245 = smul.addr %s244, 66
      %s246 = smul.addr %s245, 8
      %s247 = scalar_lea.vmem %s2, %s246
      %p248 = scmp.lt.s32.totalorder %s15, 2
      %s249 = scalar_select %p248, %s15, 2
      %s250 = smul.addr %s249, 33
      %s251 = smul.addr %s250, 8
      %s252 = scalar_lea.vmem %s3, %s251
      %p253 = scmp.lt.s32.totalorder %s15, 2
      %s254 = scalar_select %p253, %s15, 2
      %s255 = smul.addr %s254, 2
      %s256 = smul.addr %s255, 8
      %s257 = scalar_lea.vmem %s4, %s256
      %v258 = vld [vmem:[%s237] sm:$0xff]
      %v259 = vld [vmem:[%s237 + $0x8] sm:$0xff]
      %v260 = vld [vmem:[%s237 + $0x10] sm:$0xff]
      %v261 = vld [vmem:[%s237 + $0x18] sm:$0xff]
      %v262 = vmax.f32 %v258, 0.0
      %v263 = vmax.f32 %v259, 0.0
      %v264 = vmax.f32 %v260, 0.0
      %v265 = vmax.f32 %v261, 0.0
      %v266 = vld [vmem:[%s247] sm:$0xff]
      %v267 = vld [vmem:[%s247 + $0x8] sm:$0xff]
      %v268 = vld [vmem:[%s247 + $0x10] sm:$0xff]
      %v269 = vld [vmem:[%s247 + $0x18] sm:$0xff]
      %v270 = vld [vmem:[%s247 + $0x20] sm:$0xff]
      %v271 = vld [vmem:[%s247 + $0x28] sm:$0xff]
      %v272 = vld [vmem:[%s247 + $0x30] sm:$0xff]
      %v273 = vld [vmem:[%s247 + $0x38] sm:$0xff]
      %v274 = vld [vmem:[%s247 + $0x40] sm:$0xff]
      %v275 = vld [vmem:[%s247 + $0x48] sm:$0xff]
      %v276 = vld [vmem:[%s247 + $0x50] sm:$0xff]
      %v277 = vld [vmem:[%s247 + $0x58] sm:$0xff]
      %v278 = vld [vmem:[%s247 + $0x60] sm:$0xff]
      %v279 = vld [vmem:[%s247 + $0x68] sm:$0xff]
      %v280 = vld [vmem:[%s247 + $0x70] sm:$0xff]
      %v281 = vld [vmem:[%s247 + $0x78] sm:$0xff]
      %v282 = vld [vmem:[%s247 + $0x80] sm:$0xff]
      %v283 = vld [vmem:[%s247 + $0x88] sm:$0xff]
      %v284 = vld [vmem:[%s247 + $0x90] sm:$0xff]
      %v285 = vld [vmem:[%s247 + $0x98] sm:$0xff]
      %v286 = vld [vmem:[%s247 + $0xa0] sm:$0xff]
      %v287 = vld [vmem:[%s247 + $0xa8] sm:$0xff]
      %v288 = vld [vmem:[%s247 + $0xb0] sm:$0xff]
      %v289 = vld [vmem:[%s247 + $0xb8] sm:$0xff]
      %v290 = vld [vmem:[%s247 + $0xc0] sm:$0xff]
      %v291 = vld [vmem:[%s247 + $0xc8] sm:$0xff]
      %v292 = vld [vmem:[%s247 + $0xd0] sm:$0xff]
      %v293 = vld [vmem:[%s247 + $0xd8] sm:$0xff]
      %v294 = vld [vmem:[%s247 + $0xe0] sm:$0xff]
      %v295 = vld [vmem:[%s247 + $0xe8] sm:$0xff]
      %v296 = vld [vmem:[%s247 + $0xf0] sm:$0xff]
      %v297 = vld [vmem:[%s247 + $0xf8] sm:$0xff]
      %v298 = vld [vmem:[%s247 + $0x100] sm:$0xff]
      %v299 = vld [vmem:[%s247 + $0x108] sm:$0xff]
      %v300 = vld [vmem:[%s247 + $0x110] sm:$0xff]
      %v301 = vld [vmem:[%s247 + $0x118] sm:$0xff]
      %v302 = vld [vmem:[%s247 + $0x120] sm:$0xff]
      %v303 = vld [vmem:[%s247 + $0x128] sm:$0xff]
      %v304 = vld [vmem:[%s247 + $0x130] sm:$0xff]
      %v305 = vld [vmem:[%s247 + $0x138] sm:$0xff]
      %v306 = vld [vmem:[%s247 + $0x140] sm:$0xff]
      %v307 = vld [vmem:[%s247 + $0x148] sm:$0xff]
      %v308 = vld [vmem:[%s247 + $0x150] sm:$0xff]
      %v309 = vld [vmem:[%s247 + $0x158] sm:$0xff]
      %v310 = vld [vmem:[%s247 + $0x160] sm:$0xff]
      %v311 = vld [vmem:[%s247 + $0x168] sm:$0xff]
      %v312 = vld [vmem:[%s247 + $0x170] sm:$0xff]
      %v313 = vld [vmem:[%s247 + $0x178] sm:$0xff]
      %v314 = vld [vmem:[%s247 + $0x180] sm:$0xff]
      %v315 = vld [vmem:[%s247 + $0x188] sm:$0xff]
      %v316 = vld [vmem:[%s247 + $0x190] sm:$0xff]
      %v317 = vld [vmem:[%s247 + $0x198] sm:$0xff]
      %v318 = vld [vmem:[%s247 + $0x1a0] sm:$0xff]
      %v319 = vld [vmem:[%s247 + $0x1a8] sm:$0xff]
      %v320 = vld [vmem:[%s247 + $0x1b0] sm:$0xff]
      %v321 = vld [vmem:[%s247 + $0x1b8] sm:$0xff]
      %v322 = vld [vmem:[%s247 + $0x1c0] sm:$0xff]
      %v323 = vld [vmem:[%s247 + $0x1c8] sm:$0xff]
      %v324 = vld [vmem:[%s247 + $0x1d0] sm:$0xff]
      %v325 = vld [vmem:[%s247 + $0x1d8] sm:$0xff]
      %v326 = vld [vmem:[%s247 + $0x1e0] sm:$0xff]
      %v327 = vld [vmem:[%s247 + $0x1e8] sm:$0xff]
      %v328 = vld [vmem:[%s247 + $0x1f0] sm:$0xff]
      %v329 = vld [vmem:[%s247 + $0x1f8] sm:$0xff]
      %s330 = scalar_lea.vmem %s247, 512
      %v331 = vld [vmem:[%s330] ss:$8 sm:$0x3]
      %v333 = vlaneseq
      %v334 = vshrl.u32 %v333, 7
      %v335 = vsub.s32 0, %v334
      %v336 = vrot.slane %v331, %v335
      %v337 = vlaneseq
      %v338 = vshrl.u32 %v337, 7
      %v339 = vsub.s32 1, %v338
      %v340 = vrot.slane %v331, %v339
      %343 = vmatprep.subr.mxu0 %v267
      %344 = vmatpush1.msra.mxu0 %v266
      %345 = vmatprep.subr.mxu0 %v269
      %346 = vmatpush1.msra.mxu0 %v268
      %347 = vmatprep.subr.mxu0 %v271
      %348 = vmatpush1.msra.mxu0 %v270
      %349 = vmatprep.subr.mxu0 %v273
      %350 = vmatpush1.msra.mxu0 %v272
      %351 = vmatprep.subr.mxu0 %v275
      %352 = vmatpush1.msra.mxu0 %v274
      %353 = vmatprep.subr.mxu0 %v277
      %354 = vmatpush1.msra.mxu0 %v276
      %355 = vmatprep.subr.mxu0 %v279
      %356 = vmatpush1.msra.mxu0 %v278
      %357 = vmatprep.subr.mxu0 %v281
      %358 = vmatpush1.msra.mxu0 %v280
      %359 = vmatprep.subr.mxu0 %v283
      %360 = vmatpush1.msra.mxu0 %v282
      %361 = vmatprep.subr.mxu0 %v285
      %362 = vmatpush1.msra.mxu0 %v284
      %363 = vmatprep.subr.mxu0 %v287
      %364 = vmatpush1.msra.mxu0 %v286
      %365 = vmatprep.subr.mxu0 %v289
      %366 = vmatpush1.msra.mxu0 %v288
      %367 = vmatprep.subr.mxu0 %v291
      %368 = vmatpush1.msra.mxu0 %v290
      %369 = vmatprep.subr.mxu0 %v293
      %370 = vmatpush1.msra.mxu0 %v292
      %371 = vmatprep.subr.mxu0 %v295
      %372 = vmatpush1.msra.mxu0 %v294
      %373 = vmatprep.subr.mxu0 %v297
      %374 = vmatpush1.msra.mxu0 %v296
      %375 = vmatprep.subr.mxu0 %v299
      %376 = vmatpush1.msra.mxu0 %v298
      %377 = vmatprep.subr.mxu0 %v301
      %378 = vmatpush1.msra.mxu0 %v300
      %379 = vmatprep.subr.mxu0 %v303
      %380 = vmatpush1.msra.mxu0 %v302
      %381 = vmatprep.subr.mxu0 %v305
      %382 = vmatpush1.msra.mxu0 %v304
      %383 = vmatprep.subr.mxu0 %v307
      %384 = vmatpush1.msra.mxu0 %v306
      %385 = vmatprep.subr.mxu0 %v309
      %386 = vmatpush1.msra.mxu0 %v308
      %387 = vmatprep.subr.mxu0 %v311
      %388 = vmatpush1.msra.mxu0 %v310
      %389 = vmatprep.subr.mxu0 %v313
      %390 = vmatpush1.msra.mxu0 %v312
      %391 = vmatprep.subr.mxu0 %v315
      %392 = vmatpush1.msra.mxu0 %v314
      %393 = vmatprep.subr.mxu0 %v317
      %394 = vmatpush1.msra.mxu0 %v316
      %395 = vmatprep.subr.mxu0 %v319
      %396 = vmatpush1.msra.mxu0 %v318
      %397 = vmatprep.subr.mxu0 %v321
      %398 = vmatpush1.msra.mxu0 %v320
      %399 = vmatprep.subr.mxu0 %v323
      %400 = vmatpush1.msra.mxu0 %v322
      %401 = vmatprep.subr.mxu0 %v325
      %402 = vmatpush1.msra.mxu0 %v324
      %403 = vmatprep.subr.mxu0 %v327
      %404 = vmatpush1.msra.mxu0 %v326
      %405 = vmatprep.subr.mxu0 %v329
      %406 = vmatpush1.msra.mxu0 %v328
      %407 = vmatprep.mubr.f32.mxu0 %v263
      %408 = vmatmul.mubr.f32.gmra.mrb[0].mxu0 %v262
      %v409 = vpop.f32.mrb[0].mxu0
      %v410 = vadd.f32 %v336, %v409
      %v411 = vpop.f32.mrb[0].mxu0
      %v412 = vadd.f32 %v340, %v411
      %413 = vmatprep.mubr.f32.mxu0 %v265
      %414 = vmatmul.mubr.f32.gmra.mrb[0].mxu0 %v264
      %v415 = vpop.f32.mrb[0].mxu0
      %v416 = vadd.f32 %v336, %v415
      %v417 = vpop.f32.mrb[0].mxu0
      %v418 = vadd.f32 %v340, %v417
      %419 = vdwg.mxu0
      %v420 = vmax.f32 %v410, 0.0
      %v421 = vmax.f32 %v412, 0.0
      %v422 = vmax.f32 %v416, 0.0
      %v423 = vmax.f32 %v418, 0.0
      %v424 = vld [vmem:[%s252] sm:$0xff]
      %v425 = vld [vmem:[%s252 + $0x8] sm:$0xff]
      %v426 = vld [vmem:[%s252 + $0x10] sm:$0xff]
      %v427 = vld [vmem:[%s252 + $0x18] sm:$0xff]
      %v428 = vld [vmem:[%s252 + $0x20] sm:$0xff]
      %v429 = vld [vmem:[%s252 + $0x28] sm:$0xff]
      %v430 = vld [vmem:[%s252 + $0x30] sm:$0xff]
      %v431 = vld [vmem:[%s252 + $0x38] sm:$0xff]
      %v432 = vld [vmem:[%s252 + $0x40] sm:$0xff]
      %v433 = vld [vmem:[%s252 + $0x48] sm:$0xff]
      %v434 = vld [vmem:[%s252 + $0x50] sm:$0xff]
      %v435 = vld [vmem:[%s252 + $0x58] sm:$0xff]
      %v436 = vld [vmem:[%s252 + $0x60] sm:$0xff]
      %v437 = vld [vmem:[%s252 + $0x68] sm:$0xff]
      %v438 = vld [vmem:[%s252 + $0x70] sm:$0xff]
      %v439 = vld [vmem:[%s252 + $0x78] sm:$0xff]
      %v440 = vld [vmem:[%s252 + $0x80] sm:$0xff]
      %v441 = vld [vmem:[%s252 + $0x88] sm:$0xff]
      %v442 = vld [vmem:[%s252 + $0x90] sm:$0xff]
      %v443 = vld [vmem:[%s252 + $0x98] sm:$0xff]
      %v444 = vld [vmem:[%s252 + $0xa0] sm:$0xff]
      %v445 = vld [vmem:[%s252 + $0xa8] sm:$0xff]
      %v446 = vld [vmem:[%s252 + $0xb0] sm:$0xff]
      %v447 = vld [vmem:[%s252 + $0xb8] sm:$0xff]
      %v448 = vld [vmem:[%s252 + $0xc0] sm:$0xff]
      %v449 = vld [vmem:[%s252 + $0xc8] sm:$0xff]
      %v450 = vld [vmem:[%s252 + $0xd0] sm:$0xff]
      %v451 = vld [vmem:[%s252 + $0xd8] sm:$0xff]
      %v452 = vld [vmem:[%s252 + $0xe0] sm:$0xff]
      %v453 = vld [vmem:[%s252 + $0xe8] sm:$0xff]
      %v454 = vld [vmem:[%s252 + $0xf0] sm:$0xff]
      %v455 = vld [vmem:[%s252 + $0xf8] sm:$0xff]
      %v456 = vld [vmem:[%s252 + $0x100] sm:$0x1]
      %v457 = vlaneseq
      %v458 = vshrl.u32 %v457, 7
      %v459 = vsub.s32 0, %v458
      %v460 = vrot.slane %v456, %v459
      %461 = vmatprep.subr.mxu0 0.0
      %462 = vmatpush1.msra.mxu0 %v424
      %463 = vmatprep.subr.mxu0 0.0
      %464 = vmatpush1.msra.mxu0 %v425
      %465 = vmatprep.subr.mxu0 0.0
      %466 = vmatpush1.msra.mxu0 %v426
      %467 = vmatprep.subr.mxu0 0.0
      %468 = vmatpush1.msra.mxu0 %v427
      %469 = vmatprep.subr.mxu0 0.0
      %470 = vmatpush1.msra.mxu0 %v428
      %471 = vmatprep.subr.mxu0 0.0
      %472 = vmatpush1.msra.mxu0 %v429
      %473 = vmatprep.subr.mxu0 0.0
      %474 = vmatpush1.msra.mxu0 %v430
      %475 = vmatprep.subr.mxu0 0.0
      %476 = vmatpush1.msra.mxu0 %v431
      %477 = vmatprep.subr.mxu0 0.0
      %478 = vmatpush1.msra.mxu0 %v432
      %479 = vmatprep.subr.mxu0 0.0
      %480 = vmatpush1.msra.mxu0 %v433
      %481 = vmatprep.subr.mxu0 0.0
      %482 = vmatpush1.msra.mxu0 %v434
      %483 = vmatprep.subr.mxu0 0.0
      %484 = vmatpush1.msra.mxu0 %v435
      %485 = vmatprep.subr.mxu0 0.0
      %486 = vmatpush1.msra.mxu0 %v436
      %487 = vmatprep.subr.mxu0 0.0
      %488 = vmatpush1.msra.mxu0 %v437
      %489 = vmatprep.subr.mxu0 0.0
      %490 = vmatpush1.msra.mxu0 %v438
      %491 = vmatprep.subr.mxu0 0.0
      %492 = vmatpush1.msra.mxu0 %v439
      %493 = vmatprep.subr.mxu0 0.0
      %494 = vmatpush1.msra.mxu0 %v440
      %495 = vmatprep.subr.mxu0 0.0
      %496 = vmatpush1.msra.mxu0 %v441
      %497 = vmatprep.subr.mxu0 0.0
      %498 = vmatpush1.msra.mxu0 %v442
      %499 = vmatprep.subr.mxu0 0.0
      %500 = vmatpush1.msra.mxu0 %v443
      %501 = vmatprep.subr.mxu0 0.0
      %502 = vmatpush1.msra.mxu0 %v444
      %503 = vmatprep.subr.mxu0 0.0
      %504 = vmatpush1.msra.mxu0 %v445
      %505 = vmatprep.subr.mxu0 0.0
      %506 = vmatpush1.msra.mxu0 %v446
      %507 = vmatprep.subr.mxu0 0.0
      %508 = vmatpush1.msra.mxu0 %v447
      %509 = vmatprep.subr.mxu0 0.0
      %510 = vmatpush1.msra.mxu0 %v448
      %511 = vmatprep.subr.mxu0 0.0
      %512 = vmatpush1.msra.mxu0 %v449
      %513 = vmatprep.subr.mxu0 0.0
      %514 = vmatpush1.msra.mxu0 %v450
      %515 = vmatprep.subr.mxu0 0.0
      %516 = vmatpush1.msra.mxu0 %v451
      %517 = vmatprep.subr.mxu0 0.0
      %518 = vmatpush1.msra.mxu0 %v452
      %519 = vmatprep.subr.mxu0 0.0
      %520 = vmatpush1.msra.mxu0 %v453
      %521 = vmatprep.subr.mxu0 0.0
      %522 = vmatpush1.msra.mxu0 %v454
      %523 = vmatprep.subr.mxu0 0.0
      %524 = vmatpush1.msra.mxu0 %v455
      %525 = vmatprep.mubr.f32.mxu0 %v421
      %526 = vmatmul.mubr.f32.gmra.mrb[0].mxu0 %v420
      %v527 = vpop.f32.mrb[0].mxu0
      %v528 = vadd.f32 %v460, %v527
      %v529 = vpop.f32.mrb[0].mxu0
      %530 = vmatprep.mubr.f32.mxu0 %v423
      %531 = vmatmul.mubr.f32.gmra.mrb[0].mxu0 %v422
      %v532 = vpop.f32.mrb[0].mxu0
      %v533 = vadd.f32 %v460, %v532
      %v534 = vpop.f32.mrb[0].mxu0
      %535 = vdwg.mxu0
      %v536 = vld [vmem:[%s242] sm:$0xff]
      %v537 = vld [vmem:[%s242 + $0x8] sm:$0xff]
      %vm538 = vcmp.gt.f32.partialorder %v536, 0.0
      %vm539 = vcmp.gt.f32.partialorder %v537, 0.0
      %v540 = vsel %vm538, %v528, 0.0
      %v541 = vsel %vm539, %v533, 0.0
      %vm542 = vcmask 64512
      %543 = vst.msk [vmem:[%s257] sm:$0xff] %vm542, %v540
      %544 = vst.msk [vmem:[%s257 + $0x8] sm:$0xff] %vm542, %v541
      %p545 = scmp.lt.s32.totalorder %s15, 2
      %s546 = scalar_select %p545, %s15, 2
      %s547 = smul.addr %s546, 2
      %s548 = smul.addr %s547, 8
      %s549 = scalar_lea.vmem %s4, %s548
      // Predicated region
      $region37: #{per_node_valid_mlp.1} parent=35 // pred_check
        %p550 = pneg %p137
      $region38: #{per_node_valid_mlp.1} parent=35 // pred_check_branch
        %552 = sbr.rel (%p550) target = $region40
      $region39: #{per_node_valid_mlp.1} parent=35 // pred_region
        _
      $region40: #{per_node_valid_mlp.1} parent=35 // pred_fallthru
        _
    $region36: #{per_node_valid_mlp.1} parent=5 // pred_fallthru
      _
    %p553 = scmp.le.s32.totalorder 2, %s10
    // Predicated region
    $region41: #{per_node_valid_mlp.1} parent=5 // pred_check
      %p554 = pneg %p553
    $region42: #{per_node_valid_mlp.1} parent=5 // pred_check_branch
      %556 = sbr.rel (%p554) target = $region44
    $region43: #{per_node_valid_mlp.1} parent=5 // pred_region
      %s557 = ssub.s32 %s10, 2
      // Predicated region
      $region45: #{per_node_valid_mlp.1} parent=43 // pred_check
        %p558 = pneg %p143
      $region46: #{per_node_valid_mlp.1} parent=43 // pred_check_branch
        %560 = sbr.rel (%p558) target = $region48
      $region47: #{per_node_valid_mlp.1} parent=43 // pred_region
        %p561 = scmp.lt.s32.totalorder %s16, 2
        %s562 = scalar_select %p561, %s16, 2
        %s563 = smul.addr %s562, 2
        %s564 = smul.addr %s563, 8
        %s565 = scalar_lea.vmem %s4, %s564
      $region48: #{per_node_valid_mlp.1} parent=43 // pred_fallthru
        _
    $region44: #{per_node_valid_mlp.1} parent=5 // pred_fallthru
      _
  $region6: #{per_node_valid_mlp.1} parent=0 // loop_footer
    %s14 = sadd.s32 1, %s10
  $region7: #{per_node_valid_mlp.1} parent=0 // loop_footer_branch
    %9 = sbr.rel target = $region3
  $region8: #{per_node_valid_mlp.1} parent=0 // loop_exit
    _

</llo_original>
